<compile_context>
chip_gen: v6e
topology: v6e:2x2x1
jax: 0.10.0
libtpu: 0.0.40
codegen_flags: <defaults>
</compile_context>

<pallas_src>
import numpy as np
import jax
import jax.numpy as jnp
from jax.experimental import pallas as pl
from jax.experimental.pallas import tpu as pltpu


def _round_up(x, m):
    return ((x + m - 1) // m) * m


_VMEM_LIMIT = 48 * 1024 * 1024  # fits v5e/v6e (128 MiB) and v7x (64 MiB) physical VMEM


# ---------------------------------------------------------------------------
# Kernel 1 (hoisted, tiny): Ycat = dinv * (X @ Wcat), stored bf16.
# Wcat = [W_embed | W_assign | 0-pad] so pass 1 gets a single 128-lane RHS.
# ---------------------------------------------------------------------------
def _xw_kernel(x_ref, wcat_ref, dinv_ref, ycat_ref):
    y = jnp.dot(x_ref[...], wcat_ref[...], preferred_element_type=jnp.float32)
    ycat_ref[...] = (dinv_ref[...] * y).astype(ycat_ref.dtype)


def scaled_xw(x, wcat, dinv, *, tile):
    n, c = x.shape
    f = wcat.shape[1]
    return pl.pallas_call(
        _xw_kernel,
        out_shape=jax.ShapeDtypeStruct((n, f), jnp.bfloat16),
        grid_spec=pltpu.PrefetchScalarGridSpec(
            num_scalar_prefetch=0,
            grid=(n // tile,),
            in_specs=[
                pl.BlockSpec((tile, c), lambda i: (i, 0)),
                pl.BlockSpec((c, f), lambda i: (0, 0)),
                pl.BlockSpec((tile, 1), lambda i: (i, 0)),
            ],
            out_specs=pl.BlockSpec((tile, f), lambda i: (i, 0)),
        ),
        compiler_params=pltpu.CompilerParams(
            dimension_semantics=("parallel",),
            vmem_limit_bytes=_VMEM_LIMIT),
    )(x, wcat, dinv)


# ---------------------------------------------------------------------------
# Kernel 2 (adjacency pass 1): both GCN layers fused.
#   pre = dinv * (A^T @ Ycat + Ycat) + bcat        (exact self-loop folded in)
# A^T is streamed as contiguous int8 row blocks and upcast to bf16 in-kernel;
# the f32 output block is resident across the reduction axis (direct accumulate).
# ---------------------------------------------------------------------------
def _gcn_agg_kernel(at_ref, yk_ref, yi_ref, dinv_ref, bcat_ref, pre_ref):
    k = pl.program_id(1)

    @pl.when(k == 0)
    def _init():
        pre_ref[...] = jnp.zeros_like(pre_ref)

    # int8 0/1 block -> bf16 (exact) on the VPU, then a single-pass bf16 MXU dot.
    a = at_ref[...].astype(jnp.float32).astype(jnp.bfloat16)
    pre_ref[...] += jnp.dot(a, yk_ref[...], preferred_element_type=jnp.float32)

    @pl.when(k == pl.num_programs(1) - 1)
    def _finalize():
        d = dinv_ref[...]                                           # (tile, 1)
        pre_ref[...] = d * (pre_ref[...] + yi_ref[...].astype(jnp.float32)) + bcat_ref[...]


def gcn_aggregate(adj_t_i8, ycat, dinv, bcat, *, tile):
    n = adj_t_i8.shape[0]
    f = ycat.shape[1]
    return pl.pallas_call(
        _gcn_agg_kernel,
        out_shape=jax.ShapeDtypeStruct((n, f), jnp.float32),
        grid_spec=pltpu.PrefetchScalarGridSpec(
            num_scalar_prefetch=0,
            grid=(n // tile, n // tile),
            in_specs=[
                pl.BlockSpec((tile, tile), lambda i, k: (i, k)),   # A^T[i_blk, k_blk] (contiguous)
                pl.BlockSpec((tile, f), lambda i, k: (k, 0)),      # Ycat[k_blk]
                pl.BlockSpec((tile, f), lambda i, k: (i, 0)),      # Ycat[i_blk] (self loop; fetched once per i)
                pl.BlockSpec((tile, 1), lambda i, k: (i, 0)),      # dinv[i_blk]
                pl.BlockSpec((1, f), lambda i, k: (0, 0)),         # concatenated bias
            ],
            out_specs=pl.BlockSpec((tile, f), lambda i, k: (i, 0)),
        ),
        compiler_params=pltpu.CompilerParams(
            dimension_semantics=("parallel", "arbitrary"),
            vmem_limit_bytes=_VMEM_LIMIT),
    )(adj_t_i8, ycat, ycat, dinv, bcat)


# ---------------------------------------------------------------------------
# Kernel 3 (adjacency pass 2): U = A^T @ S_app (bf16 out, f32 scratch accum).
# Same contiguous int8 A^T layout; row axis "parallel" for v7x dual-TC.
# ---------------------------------------------------------------------------
def _ats_kernel(at_ref, s_ref, u_ref, acc_ref):
    k = pl.program_id(1)

    @pl.when(k == 0)
    def _init():
        acc_ref[...] = jnp.zeros_like(acc_ref)

    a = at_ref[...].astype(jnp.float32).astype(jnp.bfloat16)
    acc_ref[...] += jnp.dot(a, s_ref[...], preferred_element_type=jnp.float32)

    @pl.when(k == pl.num_programs(1) - 1)
    def _store():
        u_ref[...] = acc_ref[...].astype(u_ref.dtype)


def adjT_matmul(adj_t_i8, s_bf, *, tile):
    n = adj_t_i8.shape[0]
    m = s_bf.shape[1]
    return pl.pallas_call(
        _ats_kernel,
        out_shape=jax.ShapeDtypeStruct((n, m), jnp.bfloat16),
        grid_spec=pltpu.PrefetchScalarGridSpec(
            num_scalar_prefetch=0,
            grid=(n // tile, n // tile),
            in_specs=[
                pl.BlockSpec((tile, tile), lambda i, k: (i, k)),   # A^T[i_blk, k_blk]
                pl.BlockSpec((tile, m), lambda i, k: (k, 0)),      # S_app[k_blk]
            ],
            out_specs=pl.BlockSpec((tile, m), lambda i, k: (i, 0)),
            scratch_shapes=[pltpu.VMEM((tile, m), jnp.float32)],
        ),
        compiler_params=pltpu.CompilerParams(
            dimension_semantics=("parallel", "arbitrary"),
            vmem_limit_bytes=_VMEM_LIMIT),
    )(adj_t_i8, s_bf)


# ---------------------------------------------------------------------------
# Kernel 4 (small reduction over N, streams S^T / U / Z exactly once):
#   P = S^T @ U = (S^T A S)^T = anext^T,    xnext = S^T @ Z
# S^T is pre-transposed once in XLA, so there are no in-kernel transposes.
# ---------------------------------------------------------------------------
def _pool_reduce_kernel(st_ref, u_ref, z_ref, p_ref, x_ref):
    k = pl.program_id(0)

    @pl.when(k == 0)
    def _init():
        p_ref[...] = jnp.zeros_like(p_ref)
        x_ref[...] = jnp.zeros_like(x_ref)

    st = st_ref[...]                                               # (m, tile) bf16
    p_ref[...] += jnp.dot(st, u_ref[...], preferred_element_type=jnp.float32)
    x_ref[...] += jnp.dot(st, z_ref[...], preferred_element_type=jnp.float32)


def pool_reduce(st_bf, u_bf, z_bf, *, tile):
    m, n = st_bf.shape
    c = z_bf.shape[1]
    return pl.pallas_call(
        _pool_reduce_kernel,
        out_shape=(jax.ShapeDtypeStruct((m, m), jnp.float32),
                   jax.ShapeDtypeStruct((m, c), jnp.float32)),
        grid_spec=pltpu.PrefetchScalarGridSpec(
            num_scalar_prefetch=0,
            grid=(n // tile,),
            in_specs=[
                pl.BlockSpec((m, tile), lambda k: (0, k)),         # S^T[:, k_blk]
                pl.BlockSpec((tile, m), lambda k: (k, 0)),         # U[k_blk]
                pl.BlockSpec((tile, c), lambda k: (k, 0)),         # Z[k_blk]
            ],
            out_specs=(
                pl.BlockSpec((m, m), lambda k: (0, 0)),            # resident accumulator
                pl.BlockSpec((m, c), lambda k: (0, 0)),            # resident accumulator
            ),
        ),
        compiler_params=pltpu.CompilerParams(
            dimension_semantics=("arbitrary",),
            vmem_limit_bytes=_VMEM_LIMIT),
    )(st_bf, u_bf, z_bf)


# ---------------------------------------------------------------------------
# DiffPool forward (functional).  layer='layer2'/'layer3' in the PyTorch module
# only selects a different assign weight (nnext = 64/32/16); here nnext is
# implied by w_assign.shape[1].
# ---------------------------------------------------------------------------
def diffpool_forward(x, edge_index, batch, w_embed, b_embed, w_assign, b_assign,
                     *, tile=None):
    n, c = x.shape
    a = w_assign.shape[1]                               # nnext
    batch_np = np.asarray(batch)
    bsz = int(batch_np[-1]) + 1                         # batch[-1].item() + 1
    m = bsz * a

    # Tile selection + padding: pad N up to a multiple of the tile so the tiled,
    # double-buffered pipeline is always taken (no full-extent fallback).
    if tile is None:
        tile = min(1024, _round_up(n, 128))
    tile = max(128, (tile // 128) * 128)
    np_ = _round_up(n, tile)

    ei = jnp.asarray(edge_index)
    src, dst = ei[0], ei[1]
    # TODO(synk): the PyTorch code truncates x when max(edge_index)+1 != N
    # ("something wrong" branch); here edge indices are assumed to cover [0, N).

    # A^T stored ONCE in HBM as int8 (0/1 exact): both adjacency passes read
    # contiguous row blocks of A^T, at 1 byte/entry for the dominant N^2 stream.
    adj_t = jnp.zeros((np_, np_), jnp.int8).at[dst, src].set(1)

    # GCN degrees with self loop, from the edge list (no N^2 read).
    # Assumes a de-duplicated edge list, consistent with the dense scatter above.
    deg = jnp.ones((np_,), jnp.float32).at[dst].add(1.0)
    dinv = jax.lax.rsqrt(deg).reshape(np_, 1)           # pad rows -> 1.0 (harmless)

    # Concatenated feature transform: [W_embed | W_assign | 0-pad] -> 128-lane RHS.
    f = _round_up(c + a, 128)
    wcat = (jnp.zeros((c, f), jnp.float32)
            .at[:, :c].set(w_embed).at[:, c:c + a].set(w_assign))
    bcat = (jnp.zeros((1, f), jnp.float32)
            .at[:, :c].set(b_embed).at[:, c:c + a].set(b_assign))
    x_pad = jnp.zeros((np_, c), jnp.float32).at[:n].set(x.astype(jnp.float32))

    # 1) Ycat = dinv * (X @ Wcat) in bf16 (single pass over X, hoisted).
    ycat = scaled_xw(x_pad, wcat, dinv, tile=tile)

    # 2) adjacency pass 1: both GCN layers in one sweep over A^T.
    pre = gcn_aggregate(adj_t, ycat, dinv, bcat, tile=tile)
    z_l = pre[:, :c]                                    # embed GCN output
    s_l = jax.nn.softmax(pre[:, c:c + a], axis=-1)      # assign GCN + softmax

    # 3) masked block-tiled assignment (generate_mask semantics), cast bf16.
    onehot_np = (batch_np[:, None] == np.arange(bsz)[None, :]).astype(np.float32)
    onehot = jnp.zeros((np_, bsz), jnp.float32).at[:n].set(jnp.asarray(onehot_np))
    s_app = (onehot[:, :, None] * s_l[:, None, :]).reshape(np_, m).astype(jnp.bfloat16)
    # TODO(synk): s_app is column-block-sparse per graph (anext block-diagonal); a
    # per-graph pooling kernel would cut S traffic / FLOPs by ~bsz (follow-up).

    # 4) adjacency pass 2: U = A^T @ S_app.
    u = adjT_matmul(adj_t, s_app, tile=tile)

    # 5) small reduction: anext = (S^T U)^T = S^T A S,  xnext = S^T Z.
    st = jnp.transpose(s_app)                           # one XLA transpose, read once
    z_bf = z_l.astype(jnp.bfloat16)
    p, xnext = pool_reduce(st, u, z_bf, tile=tile)
    anext = jnp.transpose(p)

    # 6) dense_to_sparse(anext): data-dependent output shape -> host glue.
    # TODO(synk): dynamic #edges has no static-shape Pallas equivalent.
    anext_np = np.asarray(anext)
    rows, cols = np.nonzero(anext_np)
    edge_index_out = jnp.asarray(np.stack([rows, cols], axis=0).astype(np.int32))

    batch_out = jnp.repeat(jnp.arange(bsz, dtype=jnp.asarray(batch).dtype), a)
    return xnext, edge_index_out, 0, batch_out, 0


if __name__ == "__main__":
    in_channels = 32
    nnext = 64                       # layer=None -> assign_mat1 (64 clusters/graph)
    nodes_per_graph = 128
    num_graphs = 2
    N = nodes_per_graph * num_graphs

    key = jax.random.PRNGKey(0)
    kx, ke, ka, kbe, kba = jax.random.split(key, 5)
    x = jax.random.normal(kx, (N, in_channels), dtype=jnp.float32)
    w_embed = jax.random.normal(ke, (in_channels, in_channels), jnp.float32) / np.sqrt(in_channels)
    w_assign = jax.random.normal(ka, (in_channels, nnext), jnp.float32) / np.sqrt(in_channels)
    b_embed = 0.01 * jax.random.normal(kbe, (1, in_channels), jnp.float32)
    b_assign = 0.01 * jax.random.normal(kba, (1, nnext), jnp.float32)

    # symmetric ring inside each graph
    src, dst = [], []
    for g in range(num_graphs):
        off = g * nodes_per_graph
        for i in range(nodes_per_graph):
            j = (i + 1) % nodes_per_graph
            src += [off + i, off + j]
            dst += [off + j, off + i]
    edge_index = jnp.asarray(np.stack([src, dst], axis=0), dtype=jnp.int32)
    batch = jnp.asarray(np.repeat(np.arange(num_graphs), nodes_per_graph),
                        dtype=jnp.int32)

    # tile=128 so this small demo still exercises the tiled, double-buffered
    # 2x2 grid over the 256x256 int8 adjacency.
    xnext, ei_out, t1, batch_out, t2 = diffpool_forward(
        x, edge_index, batch, w_embed, b_embed, w_assign, b_assign, tile=128)
    jax.block_until_ready(xnext)
    jax.block_until_ready(ei_out)

    # ---- float64 numpy reference of the same forward pass ----
    xn = np.asarray(x, np.float64)
    ei = np.asarray(edge_index)
    A = np.zeros((N, N), np.float64)
    A[ei[0], ei[1]] = 1.0
    deg = A.sum(axis=0) + 1.0
    dinv = 1.0 / np.sqrt(deg)
    a_hat = dinv[:, None] * (A.T + np.eye(N)) * dinv[None, :]
    z_ref = a_hat @ (xn @ np.asarray(w_embed, np.float64)) + np.asarray(b_embed, np.float64)
    s_log = a_hat @ (xn @ np.asarray(w_assign, np.float64)) + np.asarray(b_assign, np.float64)
    s_ref = np.exp(s_log - s_log.max(-1, keepdims=True))
    s_ref /= s_ref.sum(-1, keepdims=True)
    bnp = np.asarray(batch)
    onh = (bnp[:, None] == np.arange(num_graphs)[None, :]).astype(np.float64)
    s_app_ref = (onh[:, :, None] * s_ref[:, None, :]).reshape(N, num_graphs * nnext)
    xnext_ref = s_app_ref.T @ z_ref
    anext_ref = s_app_ref.T @ A @ s_app_ref

    assert xnext.shape == (num_graphs * nnext, in_channels)
    # bf16 adjacency/assignment path -> slightly looser tolerance than the f32 version
    assert np.allclose(np.asarray(xnext), xnext_ref, rtol=3e-2, atol=1e-2)
    assert ei_out.shape[0] == 2
    assert ei_out.shape[1] == int((anext_ref != 0).sum())
    assert np.array_equal(np.asarray(batch_out),
                          np.repeat(np.arange(num_graphs), nnext))
    print("KERNEL_OK")
</pallas_src>

<mosaic_0001>
module attributes {stable_mosaic.version = 11 : i64} {
  func.func @_xw_kernel(%arg0: i32, %arg1: memref<128x32xf32, #tpu.memory_space<vmem>>, %arg2: memref<32x128xf32, #tpu.memory_space<vmem>>, %arg3: memref<128x1xf32, #tpu.memory_space<vmem>>, %arg4: memref<128x128xbf16, #tpu.memory_space<vmem>>) attributes {dimension_semantics = [#tpu.dimension_semantics<parallel>], iteration_bounds = array<i64: 2>, scalar_prefetch = 0 : i64, scratch_operands = 0 : i64, tpu.core_type = #tpu.core_type<tc>, window_params = [{transform_indices = @transform_0, window_bounds = array<i64: 128, 32>}, {pipeline_mode = #tpu.pipeline_mode<synchronous>, transform_indices = @transform_1, window_bounds = array<i64: 32, 128>}, {transform_indices = @transform_2, window_bounds = array<i64: 128, 1>}, {transform_indices = @transform_3, window_bounds = array<i64: 128, 128>}]} {
    %c0 = arith.constant 0 : index
    %c0_0 = arith.constant 0 : index
    %0 = vector.load %arg1[%c0, %c0_0] : memref<128x32xf32, #tpu.memory_space<vmem>>, vector<128x32xf32>
    %c0_1 = arith.constant 0 : index
    %c0_2 = arith.constant 0 : index
    %1 = vector.load %arg2[%c0_1, %c0_2] : memref<32x128xf32, #tpu.memory_space<vmem>>, vector<32x128xf32>
    %cst = arith.constant dense<0.000000e+00> : vector<128x128xf32>
    %2 = tpu.matmul %0, %1, %cst {dimension_numbers = #tpu.dot_dimension_numbers<[1], [0], [0], [1], [0, 0, 1, 1], [], []>} : vector<128x32xf32>, vector<32x128xf32>, vector<128x128xf32> -> vector<128x128xf32>
    %c0_3 = arith.constant 0 : index
    %c0_4 = arith.constant 0 : index
    %3 = vector.load %arg3[%c0_3, %c0_4] : memref<128x1xf32, #tpu.memory_space<vmem>>, vector<128x1xf32>
    %4 = vector.broadcast %3 : vector<128x1xf32> to vector<128x128xf32>
    %5 = arith.mulf %4, %2 : vector<128x128xf32>
    %6 = arith.truncf %5 : vector<128x128xf32> to vector<128x128xbf16>
    %c0_5 = arith.constant 0 : index
    %c0_6 = arith.constant 0 : index
    %7 = vector.load %arg4[%c0_5, %c0_6] : memref<128x128xbf16, #tpu.memory_space<vmem>>, vector<128x128xbf16>
    tpu.vector_store %arg4[%c0_5, %c0_6], %6 {strides = array<i32>} : memref<128x128xbf16, #tpu.memory_space<vmem>>, vector<128x128xbf16>,
    return
  }
  func.func @transform_0(%arg0: i32) -> (i32, i32) {
    %c0_i32 = arith.constant 0 : i32
    %c0_i32_0 = arith.constant 0 : i32
    return %arg0, %c0_i32 : i32, i32
  }
  func.func @transform_1(%arg0: i32) -> (i32, i32) {
    %c0_i32 = arith.constant 0 : i32
    %c0_i32_0 = arith.constant 0 : i32
    %c0_i32_1 = arith.constant 0 : i32
    return %c0_i32, %c0_i32_0 : i32, i32
  }
  func.func @transform_2(%arg0: i32) -> (i32, i32) {
    %c0_i32 = arith.constant 0 : i32
    %c0_i32_0 = arith.constant 0 : i32
    return %arg0, %c0_i32 : i32, i32
  }
  func.func @transform_3(%arg0: i32) -> (i32, i32) {
    %c0_i32 = arith.constant 0 : i32
    %c0_i32_0 = arith.constant 0 : i32
    return %arg0, %c0_i32 : i32, i32
  }
}

</mosaic_0001>

<llo_original>
// kernel: tpu_custom_call.1
$region0: #{tpu_custom_call.1}
  #allocation0 [shape = 'u32[]', space=smem, size = 0x4, offset = 0x4, fixed_abs, tag = 'smem constant byte address 0x4 - core index']
  #allocation1 [shape = 'u32[144,128]{1,0:T(1,128)}', space=vmem, size = 0x12000, scoped, tag = 'internal scratch']
  %s0 = inlined_call_operand.vmem [shape: f32[256,32], index: 0, kind: input, shape index: {}]
  %s1 = inlined_call_operand.vmem [shape: f32[32,128], index: 1, kind: input, shape index: {}]
  %s2 = inlined_call_operand.vmem [shape: f32[256,1], index: 2, kind: input, shape index: {}]
  %s3 = inlined_call_operand.hbm [shape: bf16[256,128], index: 3, kind: output, shape index: {}]
  %s4 = sld [smem:[#allocation0]]
  $region45: #{tpu_custom_call.1} parent=0
    _
  %s6 = ssub.s32 1, %s4
  %s7 = scalar_select 0, %s6, %s4
  $region1: #{tpu_custom_call.1} parent=0
    #allocation2 [shape = 'u8[65536]{0}', space=vmem, size = 0x10000, scoped, tag = 'output window, operand 0']
    #allocation3 [shape = 's32[2]{0}', space=sflag, size = 0x8, scoped, tag = 'scoped memory for tpu_custom_call.1']
    %8 = vsyncpa [#allocation3], 0
    %s9 = scalar_lea.sflag [#allocation3], 1
    %10 = vsyncpa %s9, 0
    loop: start=0, step=1, limit=4
    $region2: #{tpu_custom_call.1} parent=1 // loop_pre_header
      _
    $region3: #{tpu_custom_call.1} parent=1 // loop_header
      %s12 = sphi 0, %s16
      %p13 = scmp.ge.s32.totalorder %s12, 4
      %s22 = sphi 0, %s24
      %s25 = sphi 0, %s22
      %s26 = sphi 0, %s25
      %s42 = sphi 0, %s26
      %s46 = sphi 0, %s46
      %s48 = sphi 0, %s46
      %s49 = sphi 0, %s48
      %s63 = sphi 0, %s49
      %s69 = sphi 0, %s71
      %s72 = sphi 0, %s69
      %s73 = sphi 0, %s72
      %s89 = sphi 0, %s73
      %s95 = sphi 0, %s97
      %s98 = sphi 0, %s95
      %s99 = sphi 0, %s98
      %s115 = sphi 0, %s99
    $region4: #{tpu_custom_call.1} parent=1 // loop_header_branch
      %15 = sbr.rel (%p13) target = $region8
    $region5: #{tpu_custom_call.1} parent=1 // loop_body
      %s17 = ssub.s32 %s12, 1
      %s18 = ssub.s32 %s12, 2
      %s19 = sadd.s32 %s12, 1
      %s20 = ssub.s32 %s12, %s19
      %p21 = scmp.eq.s32.totalorder %s20, 0
      %s23 = sadd.s32 %s22, 1
      %s24 = scalar_select %p21, %s22, %s23
      %p27 = pneg %p21
      %p28 = scmp.eq.s32.totalorder %s12, 1
      %p29 = por %p27, %p28
      %p30 = scmp.ne.s32.totalorder %s22, %s25
      %p31 = scmp.eq.s32.totalorder %s12, 0
      %p32 = por %p30, %p31
      %p33 = scmp.ne.s32.totalorder %s22, %s25
      %p34 = scmp.eq.s32.totalorder %s17, 1
      %p35 = por %p33, %p34
      %p36 = scmp.ne.s32.totalorder %s25, %s26
      %p37 = scmp.eq.s32.totalorder %s17, 0
      %p38 = por %p36, %p37
      %p39 = scmp.ne.s32.totalorder %s25, %s26
      %p40 = scmp.eq.s32.totalorder %s18, 1
      %p41 = por %p39, %p40
      %p43 = scmp.ne.s32.totalorder %s26, %s42
      %p44 = scmp.eq.s32.totalorder %s18, 0
      %p45 = por %p43, %p44
      %s47 = sadd.s32 %s46, 1
      %p50 = scmp.eq.s32.totalorder %s12, 1
      %p51 = scmp.ne.s32.totalorder %s46, %s48
      %p52 = scmp.eq.s32.totalorder %s12, 0
      %p53 = por %p51, %p52
      %p54 = scmp.ne.s32.totalorder %s46, %s48
      %p55 = scmp.eq.s32.totalorder %s17, 1
      %p56 = por %p54, %p55
      %p57 = scmp.ne.s32.totalorder %s48, %s49
      %p58 = scmp.eq.s32.totalorder %s17, 0
      %p59 = por %p57, %p58
      %p60 = scmp.ne.s32.totalorder %s48, %s49
      %p61 = scmp.eq.s32.totalorder %s18, 1
      %p62 = por %p60, %p61
      %p64 = scmp.ne.s32.totalorder %s49, %s63
      %p65 = scmp.eq.s32.totalorder %s18, 0
      %p66 = por %p64, %p65
      %s67 = ssub.s32 %s12, %s19
      %p68 = scmp.eq.s32.totalorder %s67, 0
      %s70 = sadd.s32 %s69, 1
      %s71 = scalar_select %p68, %s69, %s70
      %p74 = pneg %p68
      %p75 = scmp.eq.s32.totalorder %s12, 1
      %p76 = por %p74, %p75
      %p77 = scmp.ne.s32.totalorder %s69, %s72
      %p78 = scmp.eq.s32.totalorder %s12, 0
      %p79 = por %p77, %p78
      %p80 = scmp.ne.s32.totalorder %s69, %s72
      %p81 = scmp.eq.s32.totalorder %s17, 1
      %p82 = por %p80, %p81
      %p83 = scmp.ne.s32.totalorder %s72, %s73
      %p84 = scmp.eq.s32.totalorder %s17, 0
      %p85 = por %p83, %p84
      %p86 = scmp.ne.s32.totalorder %s72, %s73
      %p87 = scmp.eq.s32.totalorder %s18, 1
      %p88 = por %p86, %p87
      %p90 = scmp.ne.s32.totalorder %s73, %s89
      %p91 = scmp.eq.s32.totalorder %s18, 0
      %p92 = por %p90, %p91
      %s93 = ssub.s32 %s12, %s19
      %p94 = scmp.eq.s32.totalorder %s93, 0
      %s96 = sadd.s32 %s95, 1
      %s97 = scalar_select %p94, %s95, %s96
      %p100 = pneg %p94
      %p101 = scmp.eq.s32.totalorder %s12, 1
      %p102 = por %p100, %p101
      %p103 = scmp.ne.s32.totalorder %s95, %s98
      %p104 = scmp.eq.s32.totalorder %s12, 0
      %p105 = por %p103, %p104
      %p106 = scmp.ne.s32.totalorder %s95, %s98
      %p107 = scmp.eq.s32.totalorder %s17, 1
      %p108 = por %p106, %p107
      %p109 = scmp.ne.s32.totalorder %s98, %s99
      %p110 = scmp.eq.s32.totalorder %s17, 0
      %p111 = por %p109, %p110
      %p112 = scmp.ne.s32.totalorder %s98, %s99
      %p113 = scmp.eq.s32.totalorder %s18, 1
      %p114 = por %p112, %p113
      %p116 = scmp.ne.s32.totalorder %s99, %s115
      %p117 = scmp.eq.s32.totalorder %s18, 0
      %p118 = por %p116, %p117
      %p119 = scmp.le.s32.totalorder 1, %s12
      %p120 = scmp.lt.s32.totalorder %s12, 3
      %p121 = pnand %p119, %p120
      %p122 = pneg %p121
      // Predicated region
      $region9: #{tpu_custom_call.1} parent=5 // pred_check
        _
      $region10: #{tpu_custom_call.1} parent=5 // pred_check_branch
        %124 = sbr.rel (%p121) target = $region12
      $region11: #{tpu_custom_call.1} parent=5 // pred_region
        %s125 = ssub.s32 %s12, 1
        // Predicated region
        $region13: #{tpu_custom_call.1} parent=11 // pred_check
          %p126 = pneg %p59
        $region14: #{tpu_custom_call.1} parent=11 // pred_check_branch
          %128 = sbr.rel (%p126) target = $region16
        $region15: #{tpu_custom_call.1} parent=11 // pred_region
          _
        $region16: #{tpu_custom_call.1} parent=11 // pred_fallthru
          _
      $region12: #{tpu_custom_call.1} parent=5 // pred_fallthru
        _
      %p129 = scmp.lt.s32.totalorder %s12, 2
      // Predicated region
      $region17: #{tpu_custom_call.1} parent=5 // pred_check
        %p130 = pneg %p129
      $region18: #{tpu_custom_call.1} parent=5 // pred_check_branch
        %132 = sbr.rel (%p130) target = $region20
      $region19: #{tpu_custom_call.1} parent=5 // pred_region
        // Predicated region
        $region21: #{tpu_custom_call.1} parent=19 // pred_check
          %p133 = pneg %p32
        $region22: #{tpu_custom_call.1} parent=19 // pred_check_branch
          %135 = sbr.rel (%p133) target = $region24
        $region23: #{tpu_custom_call.1} parent=19 // pred_region
          %s136 = smul.u32 16, %s12
          %p137 = scmp.lt.s32.totalorder %s136, 31
          %s138 = scalar_select %p137, %s136, 31
          %s139 = smul.addr %s138, 8
          %s140 = scalar_lea.vmem %s0, %s139
          %s141 = smul.u32 16, %s12
        $region24: #{tpu_custom_call.1} parent=19 // pred_fallthru
          _
        // Predicated region
        $region25: #{tpu_custom_call.1} parent=19 // pred_check
          %p142 = pneg %p79
        $region26: #{tpu_custom_call.1} parent=19 // pred_check_branch
          %144 = sbr.rel (%p142) target = $region28
        $region27: #{tpu_custom_call.1} parent=19 // pred_region
          %s145 = smul.u32 16, %s12
          %p146 = scmp.lt.s32.totalorder %s145, 31
          %s147 = scalar_select %p146, %s145, 31
          %s148 = smul.addr %s147, 8
          %s149 = scalar_lea.vmem %s2, %s148
          %s150 = smul.u32 16, %s12
        $region28: #{tpu_custom_call.1} parent=19 // pred_fallthru
          _
      $region20: #{tpu_custom_call.1} parent=5 // pred_fallthru
        _
      %p151 = scmp.le.s32.totalorder 1, %s12
      %p152 = scmp.lt.s32.totalorder %s12, 3
      %p153 = pnand %p151, %p152
      %p154 = pneg %p153
      // Predicated region
      $region29: #{tpu_custom_call.1} parent=5 // pred_check
        _
      $region30: #{tpu_custom_call.1} parent=5 // pred_check_branch
        %156 = sbr.rel (%p153) target = $region32
      $region31: #{tpu_custom_call.1} parent=5 // pred_region
        %s157 = ssub.s32 %s12, 1
        %s158 = smul.u32 16, %s17
        %p159 = scmp.lt.s32.totalorder %s158, 31
        %s160 = scalar_select %p159, %s158, 31
        %s161 = smul.addr %s160, 8
        %s162 = scalar_lea.vmem %s0, %s161
        %p163 = pneg %p38
        %p164 = pneg %p35
        %p165 = pneg %p59
        %p166 = pneg %p56
        %s167 = smul.u32 16, %s17
        %p168 = scmp.lt.s32.totalorder %s167, 31
        %s169 = scalar_select %p168, %s167, 31
        %s170 = smul.addr %s169, 8
        %s171 = scalar_lea.vmem %s2, %s170
        %p172 = pneg %p85
        %p173 = pneg %p82
        %p174 = pneg %p111
        %p175 = pneg %p108
        %s176 = sand.u32 %s98, 1
        %s177 = scalar_lea.sflag [#allocation3], %s176
        %s178 = sand.u32 %s98, 1
        %s179 = smul.addr %s178, 64
        %s180 = scalar_lea.vmem [#allocation2], %s179
        %s181 = smul.u32 16, %s17
        %p182 = scmp.lt.s32.totalorder %s181, 31
        %s183 = scalar_select %p182, %s181, 31
        %s184 = smul.addr %s183, 8
        %s185 = scalar_lea.vmem %s0, %s184
        %s186 = smul.u32 16, %s17
        %s187 = smul.u32 16, %s17
        %p188 = scmp.lt.s32.totalorder %s187, 31
        %s189 = scalar_select %p188, %s187, 31
        %s190 = smul.addr %s189, 8
        %s191 = scalar_lea.vmem %s2, %s190
        %s192 = smul.u32 16, %s17
        %s193 = smul.u32 16, %s17
        %v194 = vld [vmem:[%s185] sm:$0xff]
        %v195 = vld [vmem:[%s185 + $0x8] sm:$0xff]
        %v196 = vld [vmem:[%s185 + $0x10] sm:$0xff]
        %v197 = vld [vmem:[%s185 + $0x18] sm:$0xff]
        %v198 = vld [vmem:[%s185 + $0x20] sm:$0xff]
        %v199 = vld [vmem:[%s185 + $0x28] sm:$0xff]
        %v200 = vld [vmem:[%s185 + $0x30] sm:$0xff]
        %v201 = vld [vmem:[%s185 + $0x38] sm:$0xff]
        %v202 = vld [vmem:[%s185 + $0x40] sm:$0xff]
        %v203 = vld [vmem:[%s185 + $0x48] sm:$0xff]
        %v204 = vld [vmem:[%s185 + $0x50] sm:$0xff]
        %v205 = vld [vmem:[%s185 + $0x58] sm:$0xff]
        %v206 = vld [vmem:[%s185 + $0x60] sm:$0xff]
        %v207 = vld [vmem:[%s185 + $0x68] sm:$0xff]
        %v208 = vld [vmem:[%s185 + $0x70] sm:$0xff]
        %v209 = vld [vmem:[%s185 + $0x78] sm:$0xff]
        %v210 = vld [vmem:[%s1] sm:$0xff]
        %v211 = vld [vmem:[%s1 + $0x8] sm:$0xff]
        %v212 = vld [vmem:[%s1 + $0x10] sm:$0xff]
        %v213 = vld [vmem:[%s1 + $0x18] sm:$0xff]
        %vm214 = vcmask 261120
        %v216 = vsel %vm214, %v194, 0
        %v219 = vsel %vm214, %v195, 0
        %v222 = vsel %vm214, %v196, 0
        %v225 = vsel %vm214, %v197, 0
        %v228 = vsel %vm214, %v198, 0
        %v231 = vsel %vm214, %v199, 0
        %v234 = vsel %vm214, %v200, 0
        %v237 = vsel %vm214, %v201, 0
        %v240 = vsel %vm214, %v202, 0
        %v243 = vsel %vm214, %v203, 0
        %v246 = vsel %vm214, %v204, 0
        %v249 = vsel %vm214, %v205, 0
        %v252 = vsel %vm214, %v206, 0
        %v255 = vsel %vm214, %v207, 0
        %v258 = vsel %vm214, %v208, 0
        %v261 = vsel %vm214, %v209, 0
        %263 = vmatprep.subr.mxu0 0.0
        %264 = vmatpush1.msra.mxu0 0.0
        %265 = vmatprep.subr.mxu0 0.0
        %266 = vmatpush1.msra.mxu0 0.0
        %267 = vmatprep.subr.mxu0 0.0
        %268 = vmatpush1.msra.mxu0 0.0
        %269 = vmatprep.subr.mxu0 0.0
        %270 = vmatpush1.msra.mxu0 0.0
        %271 = vmatprep.subr.mxu0 0.0
        %272 = vmatpush1.msra.mxu0 0.0
        %273 = vmatprep.subr.mxu0 0.0
        %274 = vmatpush1.msra.mxu0 0.0
        %275 = vmatprep.subr.mxu0 0.0
        %276 = vmatpush1.msra.mxu0 0.0
        %277 = vmatprep.subr.mxu0 0.0
        %278 = vmatpush1.msra.mxu0 0.0
        %279 = vmatprep.subr.mxu0 0.0
        %280 = vmatpush1.msra.mxu0 0.0
        %281 = vmatprep.subr.mxu0 0.0
        %282 = vmatpush1.msra.mxu0 0.0
        %283 = vmatprep.subr.mxu0 0.0
        %284 = vmatpush1.msra.mxu0 0.0
        %285 = vmatprep.subr.mxu0 0.0
        %286 = vmatpush1.msra.mxu0 0.0
        %287 = vmatprep.subr.mxu0 0.0
        %288 = vmatpush1.msra.mxu0 %v213
        %289 = vmatprep.subr.mxu0 0.0
        %290 = vmatpush1.msra.mxu0 %v212
        %291 = vmatprep.subr.mxu0 0.0
        %292 = vmatpush1.msra.mxu0 %v211
        %293 = vmatprep.subr.mxu0 0.0
        %294 = vmatpush1.msra.mxu0 %v210
        %295 = vmatprep.subr.mxu0 0.0
        %296 = vmatpush2.msra.mxu0 0.0
        %297 = vmatprep.subr.mxu0 0.0
        %298 = vmatpush2.msra.mxu0 0.0
        %299 = vmatprep.subr.mxu0 0.0
        %300 = vmatpush2.msra.mxu0 0.0
        %301 = vmatprep.subr.mxu0 0.0
        %302 = vmatpush2.msra.mxu0 0.0
        %303 = vmatprep.subr.mxu0 0.0
        %304 = vmatpush2.msra.mxu0 0.0
        %305 = vmatprep.subr.mxu0 0.0
        %306 = vmatpush2.msra.mxu0 0.0
        %307 = vmatprep.subr.mxu0 0.0
        %308 = vmatpush2.msra.mxu0 0.0
        %309 = vmatprep.subr.mxu0 0.0
        %310 = vmatpush2.msra.mxu0 0.0
        %311 = vmatprep.subr.mxu0 0.0
        %312 = vmatpush2.msra.mxu0 0.0
        %313 = vmatprep.subr.mxu0 0.0
        %314 = vmatpush2.msra.mxu0 0.0
        %315 = vmatprep.subr.mxu0 0.0
        %316 = vmatpush2.msra.mxu0 0.0
        %317 = vmatprep.subr.mxu0 0.0
        %318 = vmatpush2.msra.mxu0 0.0
        %319 = vmatprep.subr.mxu0 0.0
        %320 = vmatpush2.msra.mxu0 0.0
        %321 = vmatprep.subr.mxu0 0.0
        %322 = vmatpush2.msra.mxu0 0.0
        %323 = vmatprep.subr.mxu0 0.0
        %324 = vmatpush2.msra.mxu0 0.0
        %325 = vmatprep.subr.mxu0 0.0
        %326 = vmatpush2.msra.mxu0 0.0
        %327 = vmatprep.mubr.f32.mxu0 0.0
        %328 = vmatmul.mubr.f32.gmra.mxu0 %v216
        %v329 = vpop.f32.mrf.mxu0
        %v330 = vadd.f32 0.0, %v329
        %v331 = vpop.f32.mrf.mxu0
        %332 = vmatprep.mubr.f32.mxu0 0.0
        %333 = vmatmul.mubr.f32.gmra.mxu0 %v219
        %v334 = vpop.f32.mrf.mxu0
        %v335 = vadd.f32 0.0, %v334
        %v336 = vpop.f32.mrf.mxu0
        %337 = vmatprep.mubr.f32.mxu0 0.0
        %338 = vmatmul.mubr.f32.gmra.mxu0 %v222
        %v339 = vpop.f32.mrf.mxu0
        %v340 = vadd.f32 0.0, %v339
        %v341 = vpop.f32.mrf.mxu0
        %342 = vmatprep.mubr.f32.mxu0 0.0
        %343 = vmatmul.mubr.f32.gmra.mxu0 %v225
        %v344 = vpop.f32.mrf.mxu0
        %v345 = vadd.f32 0.0, %v344
        %v346 = vpop.f32.mrf.mxu0
        %347 = vmatprep.mubr.f32.mxu0 0.0
        %348 = vmatmul.mubr.f32.gmra.mxu0 %v228
        %v349 = vpop.f32.mrf.mxu0
        %v350 = vadd.f32 0.0, %v349
        %v351 = vpop.f32.mrf.mxu0
        %352 = vmatprep.mubr.f32.mxu0 0.0
        %353 = vmatmul.mubr.f32.gmra.mxu0 %v231
        %v354 = vpop.f32.mrf.mxu0
        %v355 = vadd.f32 0.0, %v354
        %v356 = vpop.f32.mrf.mxu0
        %357 = vmatprep.mubr.f32.mxu0 0.0
        %358 = vmatmul.mubr.f32.gmra.mxu0 %v234
        %v359 = vpop.f32.mrf.mxu0
        %v360 = vadd.f32 0.0, %v359
        %v361 = vpop.f32.mrf.mxu0
        %362 = vmatprep.mubr.f32.mxu0 0.0
        %363 = vmatmul.mubr.f32.gmra.mxu0 %v237
        %v364 = vpop.f32.mrf.mxu0
        %v365 = vadd.f32 0.0, %v364
        %v366 = vpop.f32.mrf.mxu0
        %367 = vmatprep.mubr.f32.mxu0 0.0
        %368 = vmatmul.mubr.f32.gmra.mxu0 %v240
        %v369 = vpop.f32.mrf.mxu0
        %v370 = vadd.f32 0.0, %v369
        %v371 = vpop.f32.mrf.mxu0
        %372 = vmatprep.mubr.f32.mxu0 0.0
        %373 = vmatmul.mubr.f32.gmra.mxu0 %v243
        %v374 = vpop.f32.mrf.mxu0
        %v375 = vadd.f32 0.0, %v374
        %v376 = vpop.f32.mrf.mxu0
        %377 = vmatprep.mubr.f32.mxu0 0.0
        %378 = vmatmul.mubr.f32.gmra.mxu0 %v246
        %v379 = vpop.f32.mrf.mxu0
        %v380 = vadd.f32 0.0, %v379
        %v381 = vpop.f32.mrf.mxu0
        %382 = vmatprep.mubr.f32.mxu0 0.0
        %383 = vmatmul.mubr.f32.gmra.mxu0 %v249
        %v384 = vpop.f32.mrf.mxu0
        %v385 = vadd.f32 0.0, %v384
        %v386 = vpop.f32.mrf.mxu0
        %387 = vmatprep.mubr.f32.mxu0 0.0
        %388 = vmatmul.mubr.f32.gmra.mxu0 %v252
        %v389 = vpop.f32.mrf.mxu0
        %v390 = vadd.f32 0.0, %v389
        %v391 = vpop.f32.mrf.mxu0
        %392 = vmatprep.mubr.f32.mxu0 0.0
        %393 = vmatmul.mubr.f32.gmra.mxu0 %v255
        %v394 = vpop.f32.mrf.mxu0
        %v395 = vadd.f32 0.0, %v394
        %v396 = vpop.f32.mrf.mxu0
        %397 = vmatprep.mubr.f32.mxu0 0.0
        %398 = vmatmul.mubr.f32.gmra.mxu0 %v258
        %v399 = vpop.f32.mrf.mxu0
        %v400 = vadd.f32 0.0, %v399
        %v401 = vpop.f32.mrf.mxu0
        %402 = vmatprep.mubr.f32.mxu0 0.0
        %403 = vmatmul.mubr.f32.gmra.mxu0 %v261
        %v404 = vpop.f32.mrf.mxu0
        %v405 = vadd.f32 0.0, %v404
        %v406 = vpop.f32.mrf.mxu0
        %407 = vdwg.mxu0
        %v408 = vld [vmem:[%s191] sm:$0xff]
        %v409 = vld [vmem:[%s191 + $0x8] sm:$0xff]
        %v410 = vld [vmem:[%s191 + $0x10] sm:$0xff]
        %v411 = vld [vmem:[%s191 + $0x18] sm:$0xff]
        %v412 = vld [vmem:[%s191 + $0x20] sm:$0xff]
        %v413 = vld [vmem:[%s191 + $0x28] sm:$0xff]
        %v414 = vld [vmem:[%s191 + $0x30] sm:$0xff]
        %v415 = vld [vmem:[%s191 + $0x38] sm:$0xff]
        %v416 = vld [vmem:[%s191 + $0x40] sm:$0xff]
        %v417 = vld [vmem:[%s191 + $0x48] sm:$0xff]
        %v418 = vld [vmem:[%s191 + $0x50] sm:$0xff]
        %v419 = vld [vmem:[%s191 + $0x58] sm:$0xff]
        %v420 = vld [vmem:[%s191 + $0x60] sm:$0xff]
        %v421 = vld [vmem:[%s191 + $0x68] sm:$0xff]
        %v422 = vld [vmem:[%s191 + $0x70] sm:$0xff]
        %v423 = vld [vmem:[%s191 + $0x78] sm:$0xff]
        %425 = vset.pattern.permute.xlu0 0
        %426 = vperm.xlu0 %425, %v408
        %v427 = vpop.permute.xlu0 %426
        %430 = vset.pattern.permute.xlu0 0
        %431 = vperm.xlu0 %430, %v409
        %v432 = vpop.permute.xlu0 %431
        %435 = vset.pattern.permute.xlu0 0
        %436 = vperm.xlu0 %435, %v410
        %v437 = vpop.permute.xlu0 %436
        %440 = vset.pattern.permute.xlu0 0
        %441 = vperm.xlu0 %440, %v411
        %v442 = vpop.permute.xlu0 %441
        %445 = vset.pattern.permute.xlu0 0
        %446 = vperm.xlu0 %445, %v412
        %v447 = vpop.permute.xlu0 %446
        %450 = vset.pattern.permute.xlu0 0
        %451 = vperm.xlu0 %450, %v413
        %v452 = vpop.permute.xlu0 %451
        %455 = vset.pattern.permute.xlu0 0
        %456 = vperm.xlu0 %455, %v414
        %v457 = vpop.permute.xlu0 %456
        %460 = vset.pattern.permute.xlu0 0
        %461 = vperm.xlu0 %460, %v415
        %v462 = vpop.permute.xlu0 %461
        %465 = vset.pattern.permute.xlu0 0
        %466 = vperm.xlu0 %465, %v416
        %v467 = vpop.permute.xlu0 %466
        %470 = vset.pattern.permute.xlu0 0
        %471 = vperm.xlu0 %470, %v417
        %v472 = vpop.permute.xlu0 %471
        %475 = vset.pattern.permute.xlu0 0
        %476 = vperm.xlu0 %475, %v418
        %v477 = vpop.permute.xlu0 %476
        %480 = vset.pattern.permute.xlu0 0
        %481 = vperm.xlu0 %480, %v419
        %v482 = vpop.permute.xlu0 %481
        %485 = vset.pattern.permute.xlu0 0
        %486 = vperm.xlu0 %485, %v420
        %v487 = vpop.permute.xlu0 %486
        %490 = vset.pattern.permute.xlu0 0
        %491 = vperm.xlu0 %490, %v421
        %v492 = vpop.permute.xlu0 %491
        %495 = vset.pattern.permute.xlu0 0
        %496 = vperm.xlu0 %495, %v422
        %v497 = vpop.permute.xlu0 %496
        %500 = vset.pattern.permute.xlu0 0
        %501 = vperm.xlu0 %500, %v423
        %v502 = vpop.permute.xlu0 %501
        %v504 = vmul.f32 %v427, %v330
        %v505 = vmul.f32 %v432, %v335
        %v506 = vmul.f32 %v437, %v340
        %v507 = vmul.f32 %v442, %v345
        %v508 = vmul.f32 %v447, %v350
        %v509 = vmul.f32 %v452, %v355
        %v510 = vmul.f32 %v457, %v360
        %v511 = vmul.f32 %v462, %v365
        %v512 = vmul.f32 %v467, %v370
        %v513 = vmul.f32 %v472, %v375
        %v514 = vmul.f32 %v477, %v380
        %v515 = vmul.f32 %v482, %v385
        %v516 = vmul.f32 %v487, %v390
        %v517 = vmul.f32 %v492, %v395
        %v518 = vmul.f32 %v497, %v400
        %v519 = vmul.f32 %v502, %v405
        %v520 = vpack.c.bf16 %v505, %v504
        %v521 = vpack.c.bf16 %v507, %v506
        %v522 = vpack.c.bf16 %v509, %v508
        %v523 = vpack.c.bf16 %v511, %v510
        %v524 = vpack.c.bf16 %v513, %v512
        %v525 = vpack.c.bf16 %v515, %v514
        %v526 = vpack.c.bf16 %v517, %v516
        %v527 = vpack.c.bf16 %v519, %v518
        %v536 = vunpack.c.l.b16 %v520
        %v537 = vunpack.c.h.b16 %v520
        %v538 = vunpack.c.l.b16 %v521
        %v539 = vunpack.c.h.b16 %v521
        %v540 = vunpack.c.l.b16 %v522
        %v541 = vunpack.c.h.b16 %v522
        %v542 = vunpack.c.l.b16 %v523
        %v543 = vunpack.c.h.b16 %v523
        %v544 = vunpack.c.l.b16 %v524
        %v545 = vunpack.c.h.b16 %v524
        %v546 = vunpack.c.l.b16 %v525
        %v547 = vunpack.c.h.b16 %v525
        %v548 = vunpack.c.l.b16 %v526
        %v549 = vunpack.c.h.b16 %v526
        %v550 = vunpack.c.l.b16 %v527
        %v551 = vunpack.c.h.b16 %v527
        %v552 = vpack.c.b16 %v536, %v536
        %v553 = vpack.c.b16 %v537, %v537
        %v554 = vpack.c.b16 %v538, %v538
        %v555 = vpack.c.b16 %v539, %v539
        %v556 = vpack.c.b16 %v540, %v540
        %v557 = vpack.c.b16 %v541, %v541
        %v558 = vpack.c.b16 %v542, %v542
        %v559 = vpack.c.b16 %v543, %v543
        %v560 = vpack.c.b16 %v544, %v544
        %v561 = vpack.c.b16 %v545, %v545
        %v562 = vpack.c.b16 %v546, %v546
        %v563 = vpack.c.b16 %v547, %v547
        %v564 = vpack.c.b16 %v548, %v548
        %v565 = vpack.c.b16 %v549, %v549
        %v566 = vpack.c.b16 %v550, %v550
        %v567 = vpack.c.b16 %v551, %v551
        %584 = vst [vmem:[%s180] sm:$0xf] %v552
        %585 = vst [vmem:[%s180 + $0x4] sm:$0xf] %v553
        %586 = vst [vmem:[%s180 + $0x8] sm:$0xf] %v554
        %587 = vst [vmem:[%s180 + $0xc] sm:$0xf] %v555
        %588 = vst [vmem:[%s180 + $0x10] sm:$0xf] %v556
        %589 = vst [vmem:[%s180 + $0x14] sm:$0xf] %v557
        %590 = vst [vmem:[%s180 + $0x18] sm:$0xf] %v558
        %591 = vst [vmem:[%s180 + $0x1c] sm:$0xf] %v559
        %592 = vst [vmem:[%s180 + $0x20] sm:$0xf] %v560
        %593 = vst [vmem:[%s180 + $0x24] sm:$0xf] %v561
        %594 = vst [vmem:[%s180 + $0x28] sm:$0xf] %v562
        %595 = vst [vmem:[%s180 + $0x2c] sm:$0xf] %v563
        %596 = vst [vmem:[%s180 + $0x30] sm:$0xf] %v564
        %597 = vst [vmem:[%s180 + $0x34] sm:$0xf] %v565
        %598 = vst [vmem:[%s180 + $0x38] sm:$0xf] %v566
        %599 = vst [vmem:[%s180 + $0x3c] sm:$0xf] %v567
        %s600 = sand.u32 %s98, 1
        %s601 = scalar_lea.sflag [#allocation3], %s600
        %s602 = sand.u32 %s98, 1
        %s603 = smul.addr %s602, 64
        %s604 = scalar_lea.vmem [#allocation2], %s603
        // Predicated region
        $region33: #{tpu_custom_call.1} parent=31 // pred_check
          %p605 = pneg %p108
        $region34: #{tpu_custom_call.1} parent=31 // pred_check_branch
          %607 = sbr.rel (%p605) target = $region36
        $region35: #{tpu_custom_call.1} parent=31 // pred_region
          %s608 = smul.u32 16, %s17
          %s610 = ssub.s32 1024, 1024
          %611 = vsyncadd %s601, %s610
          %s612 = smul.addr %s608, 64
          %s613 = scalar_lea.hbm %s3, %s612
          %s614 = sshll.u32 %s604, 4
          %s615 = int_to_ptr.vmem [resolvable:$true] %s614
          %620 = dma.vmem_to_hbm [thread:$0]  %s615, 1024, %s613, %s601, 64, 64, 4
        $region36: #{tpu_custom_call.1} parent=31 // pred_fallthru
          _
      $region32: #{tpu_custom_call.1} parent=5 // pred_fallthru
        _
      %p621 = scmp.le.s32.totalorder 2, %s12
      // Predicated region
      $region37: #{tpu_custom_call.1} parent=5 // pred_check
        %p622 = pneg %p621
      $region38: #{tpu_custom_call.1} parent=5 // pred_check_branch
        %624 = sbr.rel (%p622) target = $region40
      $region39: #{tpu_custom_call.1} parent=5 // pred_region
        %s625 = ssub.s32 %s12, 2
        // Predicated region
        $region41: #{tpu_custom_call.1} parent=39 // pred_check
          %p626 = pneg %p114
        $region42: #{tpu_custom_call.1} parent=39 // pred_check_branch
          %628 = sbr.rel (%p626) target = $region44
        $region43: #{tpu_custom_call.1} parent=39 // pred_region
          %s629 = sand.u32 %s99, 1
          %s630 = scalar_lea.sflag [#allocation3], %s629
          %s631 = sand.u32 %s99, 1
          %s632 = smul.addr %s631, 64
          %s633 = scalar_lea.vmem [#allocation2], %s632
          %634 = dma.done %s630, 1024
        $region44: #{tpu_custom_call.1} parent=39 // pred_fallthru
          _
      $region40: #{tpu_custom_call.1} parent=5 // pred_fallthru
        _
    $region6: #{tpu_custom_call.1} parent=1 // loop_footer
      %s16 = sadd.s32 1, %s12
    $region7: #{tpu_custom_call.1} parent=1 // loop_footer_branch
      %11 = sbr.rel target = $region3
    $region8: #{tpu_custom_call.1} parent=1 // loop_exit
      _
    %635 = vsyncpa [#allocation3], 1
    %s636 = scalar_lea.sflag [#allocation3], 1
    %637 = vsyncpa %s636, 1

</llo_original>
